<compile_context>
chip_gen: v5e
topology: v5e:2x2
jax: 0.10.0
libtpu: 0.0.40
codegen_flags: <defaults>
</compile_context>

<pallas_src>
import jax
import jax.numpy as jnp
from jax import lax
from jax.experimental import pallas as pl
from jax.experimental.pallas import tpu as pltpu

_NEG_SENTINEL = -1e30  # finite "-inf": 0 * sentinel / exp(sentinel) never NaN


def _attention_kernel(
    x_ref,       # [TILE_N, F]   node-major tile (native x dtype)
    batch_ref,   # [1, TILE_N]   int32 graph id per node (id == B marks padding)
    wpk_ref,     # [C, F+2C]     packed weights (compute dtype): wn1 | wn2 | wg1
    cpk_ref,     # [C, 5+B]      packed f32 consts: bn1|bn2|bg1|wg2|bg2|ques_nn(u)^T
    m_out_ref,   # [B, 1]        per-chunk partial max
    l_out_ref,   # [B, 1]        per-chunk partial denom
    acc_out_ref, # [B, C]        per-chunk partial weighted sum
    m_ref, l_ref, acc_ref,       # VMEM scratch running state
):
    t = pl.program_id(1)
    n_tiles = pl.num_programs(1)
    B, C = acc_ref.shape
    tile_n, F = x_ref.shape
    cd = wpk_ref.dtype  # MXU compute dtype (bf16 or f32)

    @pl.when(t == 0)
    def _init():
        m_ref[...] = jnp.full(m_ref.shape, _NEG_SENTINEL, dtype=m_ref.dtype)
        l_ref[...] = jnp.zeros(l_ref.shape, dtype=l_ref.dtype)
        acc_ref[...] = jnp.zeros(acc_ref.shape, dtype=acc_ref.dtype)

    # Resident packed constants -> static slices (no per-operand DMAs).
    wpk = wpk_ref[...]
    wn1 = wpk[:, :F]                  # [C, F]
    wn2 = wpk[:, F:F + C]             # [C, C]
    wg1 = wpk[:, F + C:F + 2 * C]     # [C, C]
    cpk = cpk_ref[...]
    bn1 = cpk[:, 0:1]
    bn2 = cpk[:, 1:2]
    bg1 = cpk[:, 2:3]
    wg2 = cpk[:, 3:4]                 # [C, 1] gate output weights
    bg2 = cpk[0:1, 4:5]               # [1, 1]
    qt = cpk[:, 5:5 + B]              # [C, B] ques_nn(u)^T (f32)

    batch_row = batch_ref[...]                                   # [1, TILE_N]
    member = batch_row == lax.broadcasted_iota(jnp.int32, (B, tile_n), 0)

    # node_nn(x): node-major tile in, lane-dense [C, TILE_N] activations out.
    x = x_ref[...].astype(cd)                                    # [TILE_N, F]
    h = jnp.maximum(
        lax.dot_general(wn1, x, (((1,), (1,)), ((), ())),
                        preferred_element_type=jnp.float32) + bn1, 0.0)
    x_proj = (jnp.dot(wn2, h.astype(cd),
                      preferred_element_type=jnp.float32) + bn2)  # [C, TILE_N] f32

    # q[batch] per node: VPU broadcast-selects for small B (no degenerate matmul).
    if B <= 8:
        q_nodes = qt[:, 0:1]
        for b in range(1, B):
            q_nodes = jnp.where(batch_row == b, qt[:, b:b + 1], q_nodes)
    else:
        # TODO(synk): for large B, switch to sorted-by-graph + scalar-prefetched
        # per-graph offsets so the one-hot/matmul and sentinel masks disappear.
        q_nodes = jnp.dot(qt.astype(cd), member.astype(cd),
                          preferred_element_type=jnp.float32)     # [C, TILE_N]

    # gate_nn(q[batch] * node_nn(x)) -> scalar score per node, [1, TILE_N].
    g_in = q_nodes * x_proj
    hg = jnp.maximum(
        jnp.dot(wg1, g_in.astype(cd),
                preferred_element_type=jnp.float32) + bg1, 0.0)   # [C, TILE_N]
    # M=1 output layer as multiply + sublane reduce (XLU), not an MXU matmul.
    s = jnp.sum(wg2 * hg, axis=0, keepdims=True) + bg2            # [1, TILE_N]

    # Online per-graph (segment) softmax update; reductions over the lane axis.
    sm = jnp.where(member, s, _NEG_SENTINEL)                      # [B, TILE_N]
    tile_max = jnp.max(sm, axis=1, keepdims=True)                 # [B, 1]
    m_old = m_ref[...]
    m_new = jnp.maximum(m_old, tile_max)
    alpha = jnp.exp(m_old - m_new)
    p = jnp.where(member, jnp.exp(sm - m_new), 0.0)               # [B, TILE_N]

    l_ref[...] = alpha * l_ref[...] + jnp.sum(p, axis=1, keepdims=True)
    # acc += p @ x_proj^T  (contract over the node/lane axis)
    acc_ref[...] = alpha * acc_ref[...] + lax.dot_general(
        p.astype(cd), x_proj.astype(cd), (((1,), (1,)), ((), ())),
        preferred_element_type=jnp.float32)                       # [B, C]
    m_ref[...] = m_new

    @pl.when(t == n_tiles - 1)
    def _finalize():
        m_out_ref[...] = m_ref[...]
        l_out_ref[...] = l_ref[...]
        acc_out_ref[...] = acc_ref[...]


def _round_up(a, b):
    return pl.cdiv(a, b) * b


def conditional_global_attention(x, u, batch, params, *, tile_n=None,
                                 num_chunks=None,
                                 compute_dtype=jnp.bfloat16):
    """x: [N, F], u: [B, C] f32, batch: [N] int32 in [0, B) (sorted), params: dict."""
    N, F = x.shape
    B, C = u.shape
    cd = jnp.dtype(compute_dtype)

    # ques_nn(u) is a tiny [B,C] MLP -> hoist it out of the per-tile hot loop.
    q = (jnp.maximum(u @ params["wq1"] + params["bq1"], 0.0)
         @ params["wq2"] + params["bq2"])                          # [B, C]

    # --- VMEM-aware tile sizing (v7x: 64 MiB physical; v5e/v6e: 128 MiB) ---
    try:
        vmem_cap = int(pltpu.get_tpu_info().vmem_capacity_bytes)
    except Exception:
        vmem_cap = 64 * 1024 * 1024
    vmem_limit = min(vmem_cap // 2, 64 * 1024 * 1024)
    budget = vmem_limit // 2                       # headroom for compiler temporaries
    c_pad = _round_up(C, 8)
    b_pad = _round_up(B, 8)
    x_item = jnp.dtype(x.dtype).itemsize
    # double-buffered node-major x tile (lane-padded to 128) + batch row
    # + live f32 [C, tile_n] / [B, tile_n] intermediates.
    bytes_per_node = (2 * 128 * x_item + 2 * 8 * 4
                      + (6 * c_pad + 4 * b_pad) * 4)
    tile_cap = max(512, min(8192, (budget // bytes_per_node) // 512 * 512))

    # 2 chunks -> both TensorCores on v7x; runs serially (harmless) on v5e/v6e.
    if num_chunks is None:
        num_chunks = 2
    num_chunks = max(1, min(num_chunks, pl.cdiv(N, 128)))
    per_chunk = pl.cdiv(N, num_chunks)

    if tile_n is None:
        tile_n = tile_cap
    tile_n = min(tile_n, tile_cap, _round_up(per_chunk, 128))
    tile_n = max(128, (tile_n // 128) * 128)
    tiles_per_chunk = pl.cdiv(per_chunk, tile_n)
    n_pad = num_chunks * tiles_per_chunk * tile_n

    # x stays node-major and in its native dtype: no wrapper transpose/cast pass.
    # (Producing x in bf16 upstream halves the dominant HBM stream.)
    x_p = x if n_pad == N else jnp.pad(x, ((0, n_pad - N), (0, 0)))
    batch_row = batch.reshape(1, N).astype(jnp.int32)
    if n_pad != N:
        # pad id == B matches no graph -> padded nodes contribute nothing
        batch_row = jnp.pad(batch_row, ((0, 0), (0, n_pad - N)),
                            constant_values=B)

    # Pack 11 tiny constants into 2 resident blocks ([out, in] weight orientation).
    w_pack = jnp.concatenate(
        [params["wn1"].T, params["wn2"].T, params["wg1"].T], axis=1
    ).astype(cd)                                                   # [C, F+2C]
    bg2_col = jnp.broadcast_to(params["bg2"].reshape(1, 1), (C, 1))
    c_pack = jnp.concatenate(
        [params["bn1"].T, params["bn2"].T, params["bg1"].T,
         params["wg2"], bg2_col, q.T], axis=1
    ).astype(jnp.float32)                                          # [C, 5+B]

    tpc = tiles_per_chunk

    # TODO(synk): on v5e, if profiling shows exposed x DMA at large tiles, add
    # pipeline_mode=pl.Buffered(3) to the x/batch BlockSpecs.
    grid_spec = pltpu.PrefetchScalarGridSpec(
        num_scalar_prefetch=0,
        grid=(num_chunks, tiles_per_chunk),
        in_specs=[
            pl.BlockSpec((tile_n, F), lambda c, t: (c * tpc + t, 0)),   # x tile
            pl.BlockSpec((1, tile_n), lambda c, t: (0, c * tpc + t)),   # batch tile
            pl.BlockSpec((C, F + 2 * C), lambda c, t: (0, 0)),          # weight pack
            pl.BlockSpec((C, 5 + B), lambda c, t: (0, 0)),              # const pack
        ],
        out_specs=(
            pl.BlockSpec((None, B, 1), lambda c, t: (c, 0, 0)),         # m partial
            pl.BlockSpec((None, B, 1), lambda c, t: (c, 0, 0)),         # l partial
            pl.BlockSpec((None, B, C), lambda c, t: (c, 0, 0)),         # acc partial
        ),
        scratch_shapes=[
            pltpu.VMEM((B, 1), jnp.float32),   # running max  m
            pltpu.VMEM((B, 1), jnp.float32),   # running denom l
            pltpu.VMEM((B, C), jnp.float32),   # running weighted sum
        ],
    )

    flops = 2 * n_pad * (C * F + 2 * C * C + C + B * C)
    bytes_accessed = (x_p.size * x_item + batch_row.size * 4
                      + w_pack.size * cd.itemsize + c_pack.size * 4
                      + num_chunks * B * (C + 2) * 4)
    cost = pl.CostEstimate(flops=int(flops),
                           transcendentals=int(2 * B * n_pad),
                           bytes_accessed=int(bytes_accessed))

    m_part, l_part, acc_part = pl.pallas_call(
        _attention_kernel,
        out_shape=(
            jax.ShapeDtypeStruct((num_chunks, B, 1), jnp.float32),
            jax.ShapeDtypeStruct((num_chunks, B, 1), jnp.float32),
            jax.ShapeDtypeStruct((num_chunks, B, C), jnp.float32),
        ),
        grid_spec=grid_spec,
        compiler_params=pltpu.CompilerParams(
            dimension_semantics=("parallel", "arbitrary"),
            vmem_limit_bytes=vmem_limit),
        cost_estimate=cost,
    )(x_p, batch_row, w_pack, c_pack)

    # Tiny XLA epilogue: merge the per-chunk online-softmax partials.
    m = jnp.max(m_part, axis=0)                       # [B, 1]
    scale = jnp.exp(m_part - m)                       # empty chunks: l=acc=0 anyway
    l = jnp.sum(l_part * scale, axis=0)               # [B, 1]
    acc = jnp.sum(acc_part * scale, axis=0)           # [B, C]
    return acc / (l + 1e-16)


def init_params(key, num_node_features, num_out_features):
    """Deterministic synthetic init mirroring the module's parameter shapes.

    Weights stored [in, out] (transposed vs torch.nn.Linear), biases [1, out].
    """
    C = num_out_features
    F = num_node_features
    shapes = {
        # node_nn: Lin(F, C), ReLU, Lin(C, C)
        "wn1": (F, C), "bn1": (1, C), "wn2": (C, C), "bn2": (1, C),
        # ques_nn: Lin(C, C), ReLU, Lin(C, C)
        "wq1": (C, C), "bq1": (1, C), "wq2": (C, C), "bq2": (1, C),
        # gate_nn: Lin(C, C), ReLU, Lin(C, 1)
        "wg1": (C, C), "bg1": (1, C), "wg2": (C, 1), "bg2": (1, 1),
    }
    params = {}
    keys = jax.random.split(key, len(shapes))
    for k, (name, shp) in zip(keys, sorted(shapes.items())):
        fan_in = shp[0] if name.startswith("w") else shp[1]
        scale = 1.0 / jnp.sqrt(jnp.maximum(fan_in, 1)).astype(jnp.float32)
        params[name] = scale * jax.random.normal(k, shp, dtype=jnp.float32)
    return params


def reference_forward(x, u, batch, params):
    """Pure-JAX reference reproducing the PyTorch forward semantics."""
    def mlp(z, w1, b1, w2, b2):
        return jnp.maximum(z @ w1 + b1, 0.0) @ w2 + b2

    B = u.shape[0]
    x_proj = mlp(x, params["wn1"], params["bn1"], params["wn2"], params["bn2"])
    q = mlp(u, params["wq1"], params["bq1"], params["wq2"], params["bq2"])
    g_in = q[batch] * x_proj
    s = mlp(g_in, params["wg1"], params["bg1"], params["wg2"], params["bg2"])  # [N,1]
    # torch_geometric.utils.softmax over segments
    seg_max = jax.ops.segment_max(s[:, 0], batch, num_segments=B)
    e = jnp.exp(s[:, 0] - seg_max[batch])
    seg_sum = jax.ops.segment_sum(e, batch, num_segments=B)
    gate = (e / (seg_sum[batch] + 1e-16))[:, None]
    out = jax.ops.segment_sum(gate * x_proj, batch, num_segments=B)
    return out


if __name__ == "__main__":
    key = jax.random.PRNGKey(0)
    k_x, k_u, k_p = jax.random.split(key, 3)

    N = 300          # total nodes across all graphs
    F_in = 12        # num_node_features
    C = 8            # num_out_features (channels)
    B = 2            # number of graphs

    x = jax.random.normal(k_x, (N, F_in), dtype=jnp.float32)
    u = jax.random.normal(k_u, (B, C), dtype=jnp.float32)
    # nodes 0..139 -> graph 0, nodes 140..299 -> graph 1 (sorted, as PyG assumes)
    batch = jnp.concatenate([jnp.zeros((140,), jnp.int32),
                             jnp.ones((160,), jnp.int32)])

    params = init_params(k_p, F_in, C)
    ref = reference_forward(x, u, batch, params)

    # f32, small tiles: exercises the multi-tile online segment softmax AND the
    # 2-chunk (dual-TensorCore on v7x) partial merge epilogue.
    out_f32 = jax.block_until_ready(
        conditional_global_attention(x, u, batch, params, tile_n=128,
                                     compute_dtype=jnp.float32))
    assert out_f32.shape == (B, C)
    assert jnp.allclose(out_f32, ref, atol=1e-4, rtol=1e-4), (out_f32, ref)

    # single-chunk path (grid = (1, n_tiles)).
    out_1c = jax.block_until_ready(
        conditional_global_attention(x, u, batch, params, tile_n=128,
                                     num_chunks=1, compute_dtype=jnp.float32))
    assert jnp.allclose(out_1c, ref, atol=1e-4, rtol=1e-4), (out_1c, ref)

    # default path: bf16 MXU operands, auto VMEM-aware tile size, 2 chunks.
    out_bf16 = jax.block_until_ready(
        conditional_global_attention(x, u, batch, params))
    assert out_bf16.shape == (B, C)
    assert jnp.allclose(out_bf16, ref, atol=2e-1, rtol=1e-1), (out_bf16, ref)

    print("KERNEL_OK")
</pallas_src>

<mosaic_0001>
module attributes {stable_mosaic.version = 11 : i64} {
  func.func @_attention_kernel(%arg0: i32, %arg1: i32, %arg2: memref<128x12xf32, #tpu.memory_space<vmem>>, %arg3: memref<1x128xi32, #tpu.memory_space<vmem>>, %arg4: memref<8x28xf32, #tpu.memory_space<vmem>>, %arg5: memref<8x7xf32, #tpu.memory_space<vmem>>, %arg6: memref<1x2x1xf32, #tpu.memory_space<vmem>>, %arg7: memref<1x2x1xf32, #tpu.memory_space<vmem>>, %arg8: memref<1x2x8xf32, #tpu.memory_space<vmem>>, %arg9: memref<2x1xf32, #tpu.memory_space<vmem>>, %arg10: memref<2x1xf32, #tpu.memory_space<vmem>>, %arg11: memref<2x8xf32, #tpu.memory_space<vmem>>) attributes {dimension_semantics = [#tpu.dimension_semantics<parallel>, #tpu.dimension_semantics<arbitrary>], iteration_bounds = array<i64: 2, 2>, scalar_prefetch = 0 : i64, scratch_operands = 3 : i64, tpu.core_type = #tpu.core_type<tc>, window_params = [{transform_indices = @transform_0, window_bounds = array<i64: 128, 12>}, {transform_indices = @transform_1, window_bounds = array<i64: 1, 128>}, {pipeline_mode = #tpu.pipeline_mode<synchronous>, transform_indices = @transform_2, window_bounds = array<i64: 8, 28>}, {pipeline_mode = #tpu.pipeline_mode<synchronous>, transform_indices = @transform_3, window_bounds = array<i64: 8, 7>}, {transform_indices = @transform_4, window_bounds = array<i64: 1, 2, 1>}, {transform_indices = @transform_5, window_bounds = array<i64: 1, 2, 1>}, {transform_indices = @transform_6, window_bounds = array<i64: 1, 2, 8>}]} {
    %c0_i32 = arith.constant 0 : i32
    %0 = arith.cmpi eq, %arg1, %c0_i32 : i32
    %1 = arith.extui %0 : i1 to i32
    %c0_i32_0 = arith.constant 0 : i32
    %2 = arith.cmpi ne, %1, %c0_i32_0 : i32
    scf.if %2 {
      %cst_32 = arith.constant -1.000000e+30 : f32
      %81 = vector.broadcast %cst_32 : f32 to vector<2x1xf32>
      %c0_33 = arith.constant 0 : index
      %c0_34 = arith.constant 0 : index
      %82 = vector.load %arg9[%c0_33, %c0_34] : memref<2x1xf32, #tpu.memory_space<vmem>>, vector<2x1xf32>
      tpu.vector_store %arg9[%c0_33, %c0_34], %81 {strides = array<i32>} : memref<2x1xf32, #tpu.memory_space<vmem>>, vector<2x1xf32>,
      %cst_35 = arith.constant 0.000000e+00 : f32
      %83 = vector.broadcast %cst_35 : f32 to vector<2x1xf32>
      %c0_36 = arith.constant 0 : index
      %c0_37 = arith.constant 0 : index
      %84 = vector.load %arg10[%c0_36, %c0_37] : memref<2x1xf32, #tpu.memory_space<vmem>>, vector<2x1xf32>
      tpu.vector_store %arg10[%c0_36, %c0_37], %83 {strides = array<i32>} : memref<2x1xf32, #tpu.memory_space<vmem>>, vector<2x1xf32>,
      %cst_38 = arith.constant 0.000000e+00 : f32
      %85 = vector.broadcast %cst_38 : f32 to vector<2x8xf32>
      %c0_39 = arith.constant 0 : index
      %c0_40 = arith.constant 0 : index
      %86 = vector.load %arg11[%c0_39, %c0_40] : memref<2x8xf32, #tpu.memory_space<vmem>>, vector<2x8xf32>
      tpu.vector_store %arg11[%c0_39, %c0_40], %85 {strides = array<i32>} : memref<2x8xf32, #tpu.memory_space<vmem>>, vector<2x8xf32>,
    } else {
    }
    %c0 = arith.constant 0 : index
    %c0_1 = arith.constant 0 : index
    %3 = vector.load %arg4[%c0, %c0_1] : memref<8x28xf32, #tpu.memory_space<vmem>>, vector<8x28xf32>
    %4 = vector.extract_strided_slice %3 {offsets = [0, 0], sizes = [8, 12], strides = [1, 1]} : vector<8x28xf32> to vector<8x12xf32>
    %5 = vector.extract_strided_slice %3 {offsets = [0, 12], sizes = [8, 8], strides = [1, 1]} : vector<8x28xf32> to vector<8x8xf32>
    %6 = vector.extract_strided_slice %3 {offsets = [0, 20], sizes = [8, 8], strides = [1, 1]} : vector<8x28xf32> to vector<8x8xf32>
    %c0_2 = arith.constant 0 : index
    %c0_3 = arith.constant 0 : index
    %7 = vector.load %arg5[%c0_2, %c0_3] : memref<8x7xf32, #tpu.memory_space<vmem>>, vector<8x7xf32>
    %8 = vector.extract_strided_slice %7 {offsets = [0, 0], sizes = [8, 1], strides = [1, 1]} : vector<8x7xf32> to vector<8x1xf32>
    %9 = vector.extract_strided_slice %7 {offsets = [0, 1], sizes = [8, 1], strides = [1, 1]} : vector<8x7xf32> to vector<8x1xf32>
    %10 = vector.extract_strided_slice %7 {offsets = [0, 2], sizes = [8, 1], strides = [1, 1]} : vector<8x7xf32> to vector<8x1xf32>
    %11 = vector.extract_strided_slice %7 {offsets = [0, 3], sizes = [8, 1], strides = [1, 1]} : vector<8x7xf32> to vector<8x1xf32>
    %12 = vector.extract_strided_slice %7 {offsets = [0, 4], sizes = [1, 1], strides = [1, 1]} : vector<8x7xf32> to vector<1x1xf32>
    %13 = vector.extract_strided_slice %7 {offsets = [0, 5], sizes = [8, 2], strides = [1, 1]} : vector<8x7xf32> to vector<8x2xf32>
    %c0_4 = arith.constant 0 : index
    %c0_5 = arith.constant 0 : index
    %14 = vector.load %arg3[%c0_4, %c0_5] : memref<1x128xi32, #tpu.memory_space<vmem>>, vector<1x128xi32>
    %15 = tpu.iota {dimensions = array<i32: 0>} : vector<2x128xi32>
    %16 = vector.broadcast %14 : vector<1x128xi32> to vector<2x128xi32>
    %17 = arith.cmpi eq, %16, %15 : vector<2x128xi32>
    %c0_6 = arith.constant 0 : index
    %c0_7 = arith.constant 0 : index
    %18 = vector.load %arg2[%c0_6, %c0_7] : memref<128x12xf32, #tpu.memory_space<vmem>>, vector<128x12xf32>
    %cst = arith.constant dense<0.000000e+00> : vector<8x128xf32>
    %19 = tpu.matmul %4, %18, %cst {dimension_numbers = #tpu.dot_dimension_numbers<[1], [1], [0], [0], [0, 0, 1, 0], [], []>} : vector<8x12xf32>, vector<128x12xf32>, vector<8x128xf32> -> vector<8x128xf32>
    %20 = vector.broadcast %8 : vector<8x1xf32> to vector<8x128xf32>
    %21 = arith.addf %19, %20 : vector<8x128xf32>
    %cst_8 = arith.constant 0.000000e+00 : f32
    %22 = vector.broadcast %cst_8 : f32 to vector<8x128xf32>
    %23 = arith.maximumf %21, %22 : vector<8x128xf32>
    %cst_9 = arith.constant dense<0.000000e+00> : vector<8x128xf32>
    %24 = tpu.matmul %5, %23, %cst_9 {dimension_numbers = #tpu.dot_dimension_numbers<[1], [0], [0], [1], [0, 0, 1, 1], [], []>} : vector<8x8xf32>, vector<8x128xf32>, vector<8x128xf32> -> vector<8x128xf32>
    %25 = vector.broadcast %9 : vector<8x1xf32> to vector<8x128xf32>
    %26 = arith.addf %24, %25 : vector<8x128xf32>
    %27 = vector.extract_strided_slice %13 {offsets = [0, 0], sizes = [8, 1], strides = [1, 1]} : vector<8x2xf32> to vector<8x1xf32>
    %c1_i32 = arith.constant 1 : i32
    %28 = vector.broadcast %c1_i32 : i32 to vector<1x128xi32>
    %29 = arith.cmpi eq, %14, %28 : vector<1x128xi32>
    %30 = vector.extract_strided_slice %13 {offsets = [0, 1], sizes = [8, 1], strides = [1, 1]} : vector<8x2xf32> to vector<8x1xf32>
    %31 = vector.shape_cast %29 : vector<1x128xi1> to vector<1x128xi1>
    %32 = vector.broadcast %31 : vector<1x128xi1> to vector<8x128xi1>
    %33 = vector.shape_cast %30 : vector<8x1xf32> to vector<8x1xf32>
    %34 = vector.broadcast %33 : vector<8x1xf32> to vector<8x128xf32>
    %35 = vector.shape_cast %27 : vector<8x1xf32> to vector<8x1xf32>
    %36 = vector.broadcast %35 : vector<8x1xf32> to vector<8x128xf32>
    %37 = arith.select %32, %34, %36 : vector<8x128xi1>, vector<8x128xf32>
    %38 = arith.mulf %37, %26 : vector<8x128xf32>
    %cst_10 = arith.constant dense<0.000000e+00> : vector<8x128xf32>
    %39 = tpu.matmul %6, %38, %cst_10 {dimension_numbers = #tpu.dot_dimension_numbers<[1], [0], [0], [1], [0, 0, 1, 1], [], []>} : vector<8x8xf32>, vector<8x128xf32>, vector<8x128xf32> -> vector<8x128xf32>
    %40 = vector.broadcast %10 : vector<8x1xf32> to vector<8x128xf32>
    %41 = arith.addf %39, %40 : vector<8x128xf32>
    %cst_11 = arith.constant 0.000000e+00 : f32
    %42 = vector.broadcast %cst_11 : f32 to vector<8x128xf32>
    %43 = arith.maximumf %41, %42 : vector<8x128xf32>
    %44 = vector.broadcast %11 : vector<8x1xf32> to vector<8x128xf32>
    %45 = arith.mulf %44, %43 : vector<8x128xf32>
    %cst_12 = arith.constant dense<0.000000e+00> : vector<128xf32>
    %46 = vector.multi_reduction <add>, %45, %cst_12 [0] : vector<8x128xf32> to vector<128xf32>
    %47 = vector.shape_cast %46 : vector<128xf32> to vector<1x128xf32>
    %48 = vector.broadcast %12 : vector<1x1xf32> to vector<1x128xf32>
    %49 = arith.addf %47, %48 : vector<1x128xf32>
    %cst_13 = arith.constant -1.000000e+30 : f32
    %50 = vector.shape_cast %49 : vector<1x128xf32> to vector<1x128xf32>
    %51 = vector.broadcast %50 : vector<1x128xf32> to vector<2x128xf32>
    %52 = vector.broadcast %cst_13 : f32 to vector<2x128xf32>
    %53 = arith.select %17, %51, %52 : vector<2x128xi1>, vector<2x128xf32>
    %cst_14 = arith.constant dense<0xFF800000> : vector<2xf32>
    %54 = vector.multi_reduction <maximumf>, %53, %cst_14 [1] : vector<2x128xf32> to vector<2xf32>
    %55 = vector.shape_cast %54 : vector<2xf32> to vector<2x1xf32>
    %c0_15 = arith.constant 0 : index
    %c0_16 = arith.constant 0 : index
    %56 = vector.load %arg9[%c0_15, %c0_16] : memref<2x1xf32, #tpu.memory_space<vmem>>, vector<2x1xf32>
    %57 = arith.maximumf %56, %55 : vector<2x1xf32>
    %58 = arith.subf %56, %57 : vector<2x1xf32>
    %59 = math.exp %58 : vector<2x1xf32>
    %60 = vector.broadcast %57 : vector<2x1xf32> to vector<2x128xf32>
    %61 = arith.subf %53, %60 : vector<2x128xf32>
    %62 = math.exp %61 : vector<2x128xf32>
    %cst_17 = arith.constant 0.000000e+00 : f32
    %63 = vector.broadcast %cst_17 : f32 to vector<2x128xf32>
    %64 = arith.select %17, %62, %63 : vector<2x128xi1>, vector<2x128xf32>
    %c0_18 = arith.constant 0 : index
    %c0_19 = arith.constant 0 : index
    %65 = vector.load %arg10[%c0_18, %c0_19] : memref<2x1xf32, #tpu.memory_space<vmem>>, vector<2x1xf32>
    %66 = arith.mulf %59, %65 : vector<2x1xf32>
    %cst_20 = arith.constant dense<0.000000e+00> : vector<2xf32>
    %67 = vector.multi_reduction <add>, %64, %cst_20 [1] : vector<2x128xf32> to vector<2xf32>
    %68 = vector.shape_cast %67 : vector<2xf32> to vector<2x1xf32>
    %69 = arith.addf %66, %68 : vector<2x1xf32>
    %c0_21 = arith.constant 0 : index
    %c0_22 = arith.constant 0 : index
    %70 = vector.load %arg10[%c0_21, %c0_22] : memref<2x1xf32, #tpu.memory_space<vmem>>, vector<2x1xf32>
    tpu.vector_store %arg10[%c0_21, %c0_22], %69 {strides = array<i32>} : memref<2x1xf32, #tpu.memory_space<vmem>>, vector<2x1xf32>,
    %c0_23 = arith.constant 0 : index
    %c0_24 = arith.constant 0 : index
    %71 = vector.load %arg11[%c0_23, %c0_24] : memref<2x8xf32, #tpu.memory_space<vmem>>, vector<2x8xf32>
    %72 = vector.broadcast %59 : vector<2x1xf32> to vector<2x8xf32>
    %73 = arith.mulf %72, %71 : vector<2x8xf32>
    %cst_25 = arith.constant dense<0.000000e+00> : vector<2x8xf32>
    %74 = tpu.matmul %64, %26, %cst_25 {dimension_numbers = #tpu.dot_dimension_numbers<[1], [1], [0], [0], [0, 0, 1, 0], [], []>} : vector<2x128xf32>, vector<8x128xf32>, vector<2x8xf32> -> vector<2x8xf32>
    %75 = arith.addf %73, %74 : vector<2x8xf32>
    %c0_26 = arith.constant 0 : index
    %c0_27 = arith.constant 0 : index
    %76 = vector.load %arg11[%c0_26, %c0_27] : memref<2x8xf32, #tpu.memory_space<vmem>>, vector<2x8xf32>
    tpu.vector_store %arg11[%c0_26, %c0_27], %75 {strides = array<i32>} : memref<2x8xf32, #tpu.memory_space<vmem>>, vector<2x8xf32>,
    %c0_28 = arith.constant 0 : index
    %c0_29 = arith.constant 0 : index
    %77 = vector.load %arg9[%c0_28, %c0_29] : memref<2x1xf32, #tpu.memory_space<vmem>>, vector<2x1xf32>
    tpu.vector_store %arg9[%c0_28, %c0_29], %57 {strides = array<i32>} : memref<2x1xf32, #tpu.memory_space<vmem>>, vector<2x1xf32>,
    %c1_i32_30 = arith.constant 1 : i32
    %78 = arith.cmpi eq, %arg1, %c1_i32_30 : i32
    %79 = arith.extui %78 : i1 to i32
    %c0_i32_31 = arith.constant 0 : i32
    %80 = arith.cmpi ne, %79, %c0_i32_31 : i32
    scf.if %80 {
      %c0_32 = arith.constant 0 : index
      %c0_33 = arith.constant 0 : index
      %81 = vector.load %arg9[%c0_32, %c0_33] : memref<2x1xf32, #tpu.memory_space<vmem>>, vector<2x1xf32>
      %c0_34 = arith.constant 0 : index
      %c0_35 = arith.constant 0 : index
      %c0_36 = arith.constant 0 : index
      %82 = vector.load %arg6[%c0_34, %c0_35, %c0_36] : memref<1x2x1xf32, #tpu.memory_space<vmem>>, vector<1x2x1xf32>
      %83 = vector.shape_cast %82 : vector<1x2x1xf32> to vector<2x1xf32>
      %84 = vector.shape_cast %81 : vector<2x1xf32> to vector<1x2x1xf32>
      tpu.vector_store %arg6[%c0_34, %c0_35, %c0_36], %84 {strides = array<i32>} : memref<1x2x1xf32, #tpu.memory_space<vmem>>, vector<1x2x1xf32>,
      %c0_37 = arith.constant 0 : index
      %c0_38 = arith.constant 0 : index
      %85 = vector.load %arg10[%c0_37, %c0_38] : memref<2x1xf32, #tpu.memory_space<vmem>>, vector<2x1xf32>
      %c0_39 = arith.constant 0 : index
      %c0_40 = arith.constant 0 : index
      %c0_41 = arith.constant 0 : index
      %86 = vector.load %arg7[%c0_39, %c0_40, %c0_41] : memref<1x2x1xf32, #tpu.memory_space<vmem>>, vector<1x2x1xf32>
      %87 = vector.shape_cast %86 : vector<1x2x1xf32> to vector<2x1xf32>
      %88 = vector.shape_cast %85 : vector<2x1xf32> to vector<1x2x1xf32>
      tpu.vector_store %arg7[%c0_39, %c0_40, %c0_41], %88 {strides = array<i32>} : memref<1x2x1xf32, #tpu.memory_space<vmem>>, vector<1x2x1xf32>,
      %c0_42 = arith.constant 0 : index
      %c0_43 = arith.constant 0 : index
      %89 = vector.load %arg11[%c0_42, %c0_43] : memref<2x8xf32, #tpu.memory_space<vmem>>, vector<2x8xf32>
      %c0_44 = arith.constant 0 : index
      %c0_45 = arith.constant 0 : index
      %c0_46 = arith.constant 0 : index
      %90 = vector.load %arg8[%c0_44, %c0_45, %c0_46] : memref<1x2x8xf32, #tpu.memory_space<vmem>>, vector<1x2x8xf32>
      %91 = vector.shape_cast %90 : vector<1x2x8xf32> to vector<2x8xf32>
      %92 = vector.shape_cast %89 : vector<2x8xf32> to vector<1x2x8xf32>
      tpu.vector_store %arg8[%c0_44, %c0_45, %c0_46], %92 {strides = array<i32>} : memref<1x2x8xf32, #tpu.memory_space<vmem>>, vector<1x2x8xf32>,
    } else {
    }
    return
  }
  func.func @transform_0(%arg0: i32, %arg1: i32) -> (i32, i32) {
    %c2_i32 = arith.constant 2 : i32
    %0 = arith.muli %arg0, %c2_i32 : i32
    %1 = arith.addi %0, %arg1 : i32
    %c0_i32 = arith.constant 0 : i32
    %c0_i32_0 = arith.constant 0 : i32
    return %1, %c0_i32 : i32, i32
  }
  func.func @transform_1(%arg0: i32, %arg1: i32) -> (i32, i32) {
    %c2_i32 = arith.constant 2 : i32
    %0 = arith.muli %arg0, %c2_i32 : i32
    %1 = arith.addi %0, %arg1 : i32
    %c0_i32 = arith.constant 0 : i32
    %c0_i32_0 = arith.constant 0 : i32
    return %c0_i32, %1 : i32, i32
  }
  func.func @transform_2(%arg0: i32, %arg1: i32) -> (i32, i32) {
    %c0_i32 = arith.constant 0 : i32
    %c0_i32_0 = arith.constant 0 : i32
    %c0_i32_1 = arith.constant 0 : i32
    return %c0_i32, %c0_i32_0 : i32, i32
  }
  func.func @transform_3(%arg0: i32, %arg1: i32) -> (i32, i32) {
    %c0_i32 = arith.constant 0 : i32
    %c0_i32_0 = arith.constant 0 : i32
    %c0_i32_1 = arith.constant 0 : i32
    return %c0_i32, %c0_i32_0 : i32, i32
  }
  func.func @transform_4(%arg0: i32, %arg1: i32) -> (i32, i32, i32) {
    %c0_i32 = arith.constant 0 : i32
    %c0_i32_0 = arith.constant 0 : i32
    %c0_i32_1 = arith.constant 0 : i32
    return %arg0, %c0_i32, %c0_i32_0 : i32, i32, i32
  }
  func.func @transform_5(%arg0: i32, %arg1: i32) -> (i32, i32, i32) {
    %c0_i32 = arith.constant 0 : i32
    %c0_i32_0 = arith.constant 0 : i32
    %c0_i32_1 = arith.constant 0 : i32
    return %arg0, %c0_i32, %c0_i32_0 : i32, i32, i32
  }
  func.func @transform_6(%arg0: i32, %arg1: i32) -> (i32, i32, i32) {
    %c0_i32 = arith.constant 0 : i32
    %c0_i32_0 = arith.constant 0 : i32
    %c0_i32_1 = arith.constant 0 : i32
    return %arg0, %c0_i32, %c0_i32_0 : i32, i32, i32
  }
}

</mosaic_0001>

<llo_original>
// kernel: tpu_custom_call.1
$region0: #{tpu_custom_call.1}
  #allocation0 [shape = 'u32[]', space=smem, size = 0x4, offset = 0x4, fixed_abs, tag = 'smem constant byte address 0x4 - core index']
  #allocation1 [shape = 'u32[72,128]{1,0:T(1,128)}', space=vmem, size = 0x9000, scoped, tag = 'internal scratch']
  #allocation2 [shape = 'f32[2,1]{1,0:T(2,128)}', space=vmem, size = 0x400, scoped, tag = 'scratch operand']
  #allocation3 [shape = 'f32[2,1]{1,0:T(2,128)}', space=vmem, size = 0x400, scoped, tag = 'scratch operand']
  #allocation4 [shape = 'f32[2,8]{1,0:T(2,128)}', space=vmem, size = 0x400, scoped, tag = 'scratch operand']
  %s0 = inlined_call_operand.vmem [shape: f32[512,12], index: 0, kind: input, shape index: {}]
  %s1 = inlined_call_operand.vmem [shape: s32[1,512], index: 1, kind: input, shape index: {}]
  %s2 = inlined_call_operand.vmem [shape: f32[8,28], index: 2, kind: input, shape index: {}]
  %s3 = inlined_call_operand.vmem [shape: f32[8,7], index: 3, kind: input, shape index: {}]
  %s4 = inlined_call_operand.vmem [shape: f32[2,2,1], index: 4, kind: output, shape index: {0}]
  %s5 = inlined_call_operand.vmem [shape: f32[2,2,1], index: 5, kind: output, shape index: {1}]
  %s6 = inlined_call_operand.hbm [shape: f32[2,2,8], index: 6, kind: output, shape index: {2}]
  %7 = xla_tuple %s4, %s5, %s6
  %s8 = sld [smem:[#allocation0]]
  $region73: #{tpu_custom_call.1} parent=0
    _
  %s10 = ssub.s32 1, %s8
  %s11 = scalar_select 0, %s10, %s8
  $region1: #{tpu_custom_call.1} parent=0
    #allocation5 [shape = 'u8[2048]{0}', space=vmem, size = 0x800, scoped, tag = 'output window, operand 2']
    #allocation6 [shape = 's32[2]{0}', space=sflag, size = 0x8, scoped, tag = 'scoped memory for tpu_custom_call.1']
    %12 = vsyncpa [#allocation6], 0
    %s13 = scalar_lea.sflag [#allocation6], 1
    %14 = vsyncpa %s13, 0
    loop: start=0, step=1, limit=6
    $region2: #{tpu_custom_call.1} parent=1 // loop_pre_header
      _
    $region3: #{tpu_custom_call.1} parent=1 // loop_header
      %s16 = sphi 0, %s20
      %p17 = scmp.ge.s32.totalorder %s16, 6
      %s23 = sphi 0, %s35
      %s24 = sphi 0, %s31
      %s25 = sphi 0, %s23
      %s26 = sphi 0, %s24
      %s27 = sphi 0, %s25
      %s28 = sphi 0, %s26
      %s42 = sphi 0, %s44
      %s45 = sphi 0, %s42
      %s46 = sphi 0, %s45
      %s62 = sphi 0, %s46
      %s72 = sphi 0, %s74
      %s75 = sphi 0, %s72
      %s76 = sphi 0, %s75
      %s92 = sphi 0, %s76
      %s96 = sphi 0, %s96
      %s98 = sphi 0, %s96
      %s99 = sphi 0, %s98
      %s113 = sphi 0, %s99
      %s117 = sphi 0, %s117
      %s119 = sphi 0, %s117
      %s120 = sphi 0, %s119
      %s134 = sphi 0, %s120
      %s140 = sphi 0, %s142
      %s143 = sphi 0, %s140
      %s144 = sphi 0, %s143
      %s160 = sphi 0, %s144
      %s166 = sphi 0, %s168
      %s169 = sphi 0, %s166
      %s170 = sphi 0, %s169
      %s186 = sphi 0, %s170
      %s192 = sphi 0, %s194
      %s195 = sphi 0, %s192
      %s196 = sphi 0, %s195
      %s212 = sphi 0, %s196
    $region4: #{tpu_custom_call.1} parent=1 // loop_header_branch
      %19 = sbr.rel (%p17) target = $region8
    $region5: #{tpu_custom_call.1} parent=1 // loop_body
      %s21 = ssub.s32 %s16, 1
      %s22 = ssub.s32 %s16, 2
      %s29 = sadd.s32 1, %s24
      %p30 = scmp.ge.s32.totalorder %s29, 2
      %s31 = scalar_select %p30, 0, %s29
      %s32 = sadd.s32 1, %s23
      %s33 = scalar_select %p30, %s32, %s23
      %p34 = scmp.ge.s32.totalorder %s33, 2
      %s35 = scalar_select %p34, 0, %s33
      %s36 = smul.u32 %s23, 2
      %s37 = sadd.s32 %s36, %s24
      %s38 = smul.u32 %s35, 2
      %s39 = sadd.s32 %s38, %s31
      %s40 = ssub.s32 %s37, %s39
      %p41 = scmp.eq.s32.totalorder %s40, 0
      %s43 = sadd.s32 %s42, 1
      %s44 = scalar_select %p41, %s42, %s43
      %p47 = pneg %p41
      %p48 = scmp.eq.s32.totalorder %s16, 3
      %p49 = por %p47, %p48
      %p50 = scmp.ne.s32.totalorder %s42, %s45
      %p51 = scmp.eq.s32.totalorder %s16, 0
      %p52 = por %p50, %p51
      %p53 = scmp.ne.s32.totalorder %s42, %s45
      %p54 = scmp.eq.s32.totalorder %s21, 3
      %p55 = por %p53, %p54
      %p56 = scmp.ne.s32.totalorder %s45, %s46
      %p57 = scmp.eq.s32.totalorder %s21, 0
      %p58 = por %p56, %p57
      %p59 = scmp.ne.s32.totalorder %s45, %s46
      %p60 = scmp.eq.s32.totalorder %s22, 3
      %p61 = por %p59, %p60
      %p63 = scmp.ne.s32.totalorder %s46, %s62
      %p64 = scmp.eq.s32.totalorder %s22, 0
      %p65 = por %p63, %p64
      %s66 = smul.u32 %s23, 2
      %s67 = sadd.s32 %s66, %s24
      %s68 = smul.u32 %s35, 2
      %s69 = sadd.s32 %s68, %s31
      %s70 = ssub.s32 %s67, %s69
      %p71 = scmp.eq.s32.totalorder %s70, 0
      %s73 = sadd.s32 %s72, 1
      %s74 = scalar_select %p71, %s72, %s73
      %p77 = pneg %p71
      %p78 = scmp.eq.s32.totalorder %s16, 3
      %p79 = por %p77, %p78
      %p80 = scmp.ne.s32.totalorder %s72, %s75
      %p81 = scmp.eq.s32.totalorder %s16, 0
      %p82 = por %p80, %p81
      %p83 = scmp.ne.s32.totalorder %s72, %s75
      %p84 = scmp.eq.s32.totalorder %s21, 3
      %p85 = por %p83, %p84
      %p86 = scmp.ne.s32.totalorder %s75, %s76
      %p87 = scmp.eq.s32.totalorder %s21, 0
      %p88 = por %p86, %p87
      %p89 = scmp.ne.s32.totalorder %s75, %s76
      %p90 = scmp.eq.s32.totalorder %s22, 3
      %p91 = por %p89, %p90
      %p93 = scmp.ne.s32.totalorder %s76, %s92
      %p94 = scmp.eq.s32.totalorder %s22, 0
      %p95 = por %p93, %p94
      %s97 = sadd.s32 %s96, 1
      %p100 = scmp.eq.s32.totalorder %s16, 3
      %p101 = scmp.ne.s32.totalorder %s96, %s98
      %p102 = scmp.eq.s32.totalorder %s16, 0
      %p103 = por %p101, %p102
      %p104 = scmp.ne.s32.totalorder %s96, %s98
      %p105 = scmp.eq.s32.totalorder %s21, 3
      %p106 = por %p104, %p105
      %p107 = scmp.ne.s32.totalorder %s98, %s99
      %p108 = scmp.eq.s32.totalorder %s21, 0
      %p109 = por %p107, %p108
      %p110 = scmp.ne.s32.totalorder %s98, %s99
      %p111 = scmp.eq.s32.totalorder %s22, 3
      %p112 = por %p110, %p111
      %p114 = scmp.ne.s32.totalorder %s99, %s113
      %p115 = scmp.eq.s32.totalorder %s22, 0
      %p116 = por %p114, %p115
      %s118 = sadd.s32 %s117, 1
      %p121 = scmp.eq.s32.totalorder %s16, 3
      %p122 = scmp.ne.s32.totalorder %s117, %s119
      %p123 = scmp.eq.s32.totalorder %s16, 0
      %p124 = por %p122, %p123
      %p125 = scmp.ne.s32.totalorder %s117, %s119
      %p126 = scmp.eq.s32.totalorder %s21, 3
      %p127 = por %p125, %p126
      %p128 = scmp.ne.s32.totalorder %s119, %s120
      %p129 = scmp.eq.s32.totalorder %s21, 0
      %p130 = por %p128, %p129
      %p131 = scmp.ne.s32.totalorder %s119, %s120
      %p132 = scmp.eq.s32.totalorder %s22, 3
      %p133 = por %p131, %p132
      %p135 = scmp.ne.s32.totalorder %s120, %s134
      %p136 = scmp.eq.s32.totalorder %s22, 0
      %p137 = por %p135, %p136
      %s138 = ssub.s32 %s23, %s35
      %p139 = scmp.eq.s32.totalorder %s138, 0
      %s141 = sadd.s32 %s140, 1
      %s142 = scalar_select %p139, %s140, %s141
      %p145 = pneg %p139
      %p146 = scmp.eq.s32.totalorder %s16, 3
      %p147 = por %p145, %p146
      %p148 = scmp.ne.s32.totalorder %s140, %s143
      %p149 = scmp.eq.s32.totalorder %s16, 0
      %p150 = por %p148, %p149
      %p151 = scmp.ne.s32.totalorder %s140, %s143
      %p152 = scmp.eq.s32.totalorder %s21, 3
      %p153 = por %p151, %p152
      %p154 = scmp.ne.s32.totalorder %s143, %s144
      %p155 = scmp.eq.s32.totalorder %s21, 0
      %p156 = por %p154, %p155
      %p157 = scmp.ne.s32.totalorder %s143, %s144
      %p158 = scmp.eq.s32.totalorder %s22, 3
      %p159 = por %p157, %p158
      %p161 = scmp.ne.s32.totalorder %s144, %s160
      %p162 = scmp.eq.s32.totalorder %s22, 0
      %p163 = por %p161, %p162
      %s164 = ssub.s32 %s23, %s35
      %p165 = scmp.eq.s32.totalorder %s164, 0
      %s167 = sadd.s32 %s166, 1
      %s168 = scalar_select %p165, %s166, %s167
      %p171 = pneg %p165
      %p172 = scmp.eq.s32.totalorder %s16, 3
      %p173 = por %p171, %p172
      %p174 = scmp.ne.s32.totalorder %s166, %s169
      %p175 = scmp.eq.s32.totalorder %s16, 0
      %p176 = por %p174, %p175
      %p177 = scmp.ne.s32.totalorder %s166, %s169
      %p178 = scmp.eq.s32.totalorder %s21, 3
      %p179 = por %p177, %p178
      %p180 = scmp.ne.s32.totalorder %s169, %s170
      %p181 = scmp.eq.s32.totalorder %s21, 0
      %p182 = por %p180, %p181
      %p183 = scmp.ne.s32.totalorder %s169, %s170
      %p184 = scmp.eq.s32.totalorder %s22, 3
      %p185 = por %p183, %p184
      %p187 = scmp.ne.s32.totalorder %s170, %s186
      %p188 = scmp.eq.s32.totalorder %s22, 0
      %p189 = por %p187, %p188
      %s190 = ssub.s32 %s23, %s35
      %p191 = scmp.eq.s32.totalorder %s190, 0
      %s193 = sadd.s32 %s192, 1
      %s194 = scalar_select %p191, %s192, %s193
      %p197 = pneg %p191
      %p198 = scmp.eq.s32.totalorder %s16, 3
      %p199 = por %p197, %p198
      %p200 = scmp.ne.s32.totalorder %s192, %s195
      %p201 = scmp.eq.s32.totalorder %s16, 0
      %p202 = por %p200, %p201
      %p203 = scmp.ne.s32.totalorder %s192, %s195
      %p204 = scmp.eq.s32.totalorder %s21, 3
      %p205 = por %p203, %p204
      %p206 = scmp.ne.s32.totalorder %s195, %s196
      %p207 = scmp.eq.s32.totalorder %s21, 0
      %p208 = por %p206, %p207
      %p209 = scmp.ne.s32.totalorder %s195, %s196
      %p210 = scmp.eq.s32.totalorder %s22, 3
      %p211 = por %p209, %p210
      %p213 = scmp.ne.s32.totalorder %s196, %s212
      %p214 = scmp.eq.s32.totalorder %s22, 0
      %p215 = por %p213, %p214
      %p216 = scmp.le.s32.totalorder 1, %s16
      %p217 = scmp.lt.s32.totalorder %s16, 5
      %p218 = pnand %p216, %p217
      %p219 = pneg %p218
      // Predicated region
      $region9: #{tpu_custom_call.1} parent=5 // pred_check
        _
      $region10: #{tpu_custom_call.1} parent=5 // pred_check_branch
        %221 = sbr.rel (%p218) target = $region12
      $region11: #{tpu_custom_call.1} parent=5 // pred_region
        %s222 = ssub.s32 %s16, 1
        // Predicated region
        $region13: #{tpu_custom_call.1} parent=11 // pred_check
          %p223 = pneg %p109
        $region14: #{tpu_custom_call.1} parent=11 // pred_check_branch
          %225 = sbr.rel (%p223) target = $region16
        $region15: #{tpu_custom_call.1} parent=11 // pred_region
          _
        $region16: #{tpu_custom_call.1} parent=11 // pred_fallthru
          _
        // Predicated region
        $region17: #{tpu_custom_call.1} parent=11 // pred_check
          %p226 = pneg %p130
        $region18: #{tpu_custom_call.1} parent=11 // pred_check_branch
          %228 = sbr.rel (%p226) target = $region20
        $region19: #{tpu_custom_call.1} parent=11 // pred_region
          _
        $region20: #{tpu_custom_call.1} parent=11 // pred_fallthru
          _
      $region12: #{tpu_custom_call.1} parent=5 // pred_fallthru
        _
      %p229 = scmp.lt.s32.totalorder %s16, 4
      // Predicated region
      $region21: #{tpu_custom_call.1} parent=5 // pred_check
        %p230 = pneg %p229
      $region22: #{tpu_custom_call.1} parent=5 // pred_check_branch
        %232 = sbr.rel (%p230) target = $region24
      $region23: #{tpu_custom_call.1} parent=5 // pred_region
        // Predicated region
        $region25: #{tpu_custom_call.1} parent=23 // pred_check
          %p233 = pneg %p52
        $region26: #{tpu_custom_call.1} parent=23 // pred_check_branch
          %235 = sbr.rel (%p233) target = $region28
        $region27: #{tpu_custom_call.1} parent=23 // pred_region
          %s236 = smul.u32 %s23, 2
          %s237 = sadd.s32 %s236, %s24
          %s238 = smul.u32 16, %s237
          %p239 = scmp.lt.s32.totalorder %s238, 63
          %s240 = scalar_select %p239, %s238, 63
          %s241 = smul.addr %s240, 8
          %s242 = scalar_lea.vmem %s0, %s241
          %s243 = smul.u32 %s23, 2
          %s244 = sadd.s32 %s243, %s24
          %s245 = smul.u32 16, %s244
        $region28: #{tpu_custom_call.1} parent=23 // pred_fallthru
          _
        // Predicated region
        $region29: #{tpu_custom_call.1} parent=23 // pred_check
          %p246 = pneg %p82
        $region30: #{tpu_custom_call.1} parent=23 // pred_check_branch
          %248 = sbr.rel (%p246) target = $region32
        $region31: #{tpu_custom_call.1} parent=23 // pred_region
          %s249 = smul.u32 %s23, 2
          %s250 = sadd.s32 %s249, %s24
          %p251 = scmp.lt.s32.totalorder %s250, 3
          %s252 = scalar_select %p251, %s250, 3
          %s253 = scalar_lea.vmem %s1, %s252
          %s254 = smul.u32 %s23, 2
          %s255 = sadd.s32 %s254, %s24
        $region32: #{tpu_custom_call.1} parent=23 // pred_fallthru
          _
      $region24: #{tpu_custom_call.1} parent=5 // pred_fallthru
        _
      %p256 = scmp.le.s32.totalorder 1, %s16
      %p257 = scmp.lt.s32.totalorder %s16, 5
      %p258 = pnand %p256, %p257
      %p259 = pneg %p258
      // Predicated region
      $region33: #{tpu_custom_call.1} parent=5 // pred_check
        _
      $region34: #{tpu_custom_call.1} parent=5 // pred_check_branch
        %261 = sbr.rel (%p258) target = $region36
      $region35: #{tpu_custom_call.1} parent=5 // pred_region
        %s262 = ssub.s32 %s16, 1
        %s263 = smul.u32 %s25, 2
        %s264 = sadd.s32 %s263, %s26
        %s265 = smul.u32 16, %s264
        %p266 = scmp.lt.s32.totalorder %s265, 63
        %s267 = scalar_select %p266, %s265, 63
        %s268 = smul.addr %s267, 8
        %s269 = scalar_lea.vmem %s0, %s268
        %p270 = pneg %p58
        %p271 = pneg %p55
        %s272 = smul.u32 %s25, 2
        %s273 = sadd.s32 %s272, %s26
        %p274 = scmp.lt.s32.totalorder %s273, 3
        %s275 = scalar_select %p274, %s273, 3
        %s276 = scalar_lea.vmem %s1, %s275
        %p277 = pneg %p88
        %p278 = pneg %p85
        %p279 = pneg %p109
        %p280 = pneg %p106
        %p281 = pneg %p130
        %p282 = pneg %p127
        %p283 = pneg %p156
        %p284 = pneg %p153
        %p285 = scmp.lt.s32.totalorder %s25, 1
        %s286 = scalar_select %p285, %s25, 1
        %s287 = smul.addr %s286, 2
        %s288 = scalar_lea.vmem %s4, %s287
        %p289 = pneg %p182
        %p290 = pneg %p179
        %p291 = scmp.lt.s32.totalorder %s25, 1
        %s292 = scalar_select %p291, %s25, 1
        %s293 = smul.addr %s292, 2
        %s294 = scalar_lea.vmem %s5, %s293
        %p295 = pneg %p208
        %p296 = pneg %p205
        %s297 = sand.u32 %s195, 1
        %s298 = scalar_lea.sflag [#allocation6], %s297
        %s299 = sand.u32 %s195, 1
        %s300 = smul.addr %s299, 2
        %s301 = scalar_lea.vmem [#allocation5], %s300
        %s302 = smul.u32 %s25, 2
        %s303 = sadd.s32 %s302, %s26
        %s304 = smul.u32 16, %s303
        %p305 = scmp.lt.s32.totalorder %s304, 63
        %s306 = scalar_select %p305, %s304, 63
        %s307 = smul.addr %s306, 8
        %s308 = scalar_lea.vmem %s0, %s307
        %s309 = smul.u32 %s25, 2
        %s310 = sadd.s32 %s309, %s26
        %s311 = smul.u32 16, %s310
        %s312 = smul.u32 %s25, 2
        %s313 = sadd.s32 %s312, %s26
        %p314 = scmp.lt.s32.totalorder %s313, 3
        %s315 = scalar_select %p314, %s313, 3
        %s316 = scalar_lea.vmem %s1, %s315
        %s317 = smul.u32 %s25, 2
        %s318 = sadd.s32 %s317, %s26
        %p319 = scmp.lt.s32.totalorder %s25, 1
        %s320 = scalar_select %p319, %s25, 1
        %s321 = smul.addr %s320, 2
        %s322 = scalar_lea.vmem %s4, %s321
        %p323 = scmp.lt.s32.totalorder %s25, 1
        %s324 = scalar_select %p323, %s25, 1
        %s325 = smul.addr %s324, 2
        %s326 = scalar_lea.vmem %s5, %s325
        %p327 = scmp.eq.s32.totalorder %s26, 0
        // Predicated region
        $region37: #{tpu_custom_call.1} parent=35 // pred_check
          %p328 = pneg %p327
        $region38: #{tpu_custom_call.1} parent=35 // pred_check_branch
          %330 = sbr.rel (%p328) target = $region40
        $region39: #{tpu_custom_call.1} parent=35 // pred_region
          %vm331 = vcmask 1024
          %332 = vst.msk [vmem:[#allocation2] sm:$0x3] %vm331, -1e+30
          %333 = vst.msk [vmem:[#allocation3] sm:$0x3] %vm331, 0.0
          %vm334 = vcmask 58368
          %335 = vst.msk [vmem:[#allocation4] sm:$0x3] %vm334, 0.0
        $region40: #{tpu_custom_call.1} parent=35 // pred_fallthru
          _
        %v336 = vld [vmem:[%s2] sm:$0xff]
        %v337 = vld [vmem:[%s3] sm:$0xff]
        %v338 = vld [vmem:[%s316] sm:$0x1]
        %v339 = vlaneseq
        %v340 = vshrl.u32 %v339, 7
        %v341 = vperm.slane %v338, 0
        %vm342 = vcmp.eq.s32.totalorder %v341, %v340
        %v343 = vld [vmem:[%s308] sm:$0xff]
        %v344 = vld [vmem:[%s308 + $0x8] sm:$0xff]
        %v345 = vld [vmem:[%s308 + $0x10] sm:$0xff]
        %v346 = vld [vmem:[%s308 + $0x18] sm:$0xff]
        %v347 = vld [vmem:[%s308 + $0x20] sm:$0xff]
        %v348 = vld [vmem:[%s308 + $0x28] sm:$0xff]
        %v349 = vld [vmem:[%s308 + $0x30] sm:$0xff]
        %v350 = vld [vmem:[%s308 + $0x38] sm:$0xff]
        %v351 = vld [vmem:[%s308 + $0x40] sm:$0xff]
        %v352 = vld [vmem:[%s308 + $0x48] sm:$0xff]
        %v353 = vld [vmem:[%s308 + $0x50] sm:$0xff]
        %v354 = vld [vmem:[%s308 + $0x58] sm:$0xff]
        %v355 = vld [vmem:[%s308 + $0x60] sm:$0xff]
        %v356 = vld [vmem:[%s308 + $0x68] sm:$0xff]
        %v357 = vld [vmem:[%s308 + $0x70] sm:$0xff]
        %v358 = vld [vmem:[%s308 + $0x78] sm:$0xff]
        %360 = vset.pattern.permute.xlu0 0
        %361 = vperm.xlu0 %360, %v337
        %v362 = vpop.permute.xlu0 %361
        %vm364 = vcmask 97280
        %v366 = vsel %vm364, %v336, 0
        %v369 = vsel %vm364, %v343, 0
        %v372 = vsel %vm364, %v344, 0
        %v375 = vsel %vm364, %v345, 0
        %v378 = vsel %vm364, %v346, 0
        %v381 = vsel %vm364, %v347, 0
        %v384 = vsel %vm364, %v348, 0
        %v387 = vsel %vm364, %v349, 0
        %v390 = vsel %vm364, %v350, 0
        %v393 = vsel %vm364, %v351, 0
        %v396 = vsel %vm364, %v352, 0
        %v399 = vsel %vm364, %v353, 0
        %v402 = vsel %vm364, %v354, 0
        %v405 = vsel %vm364, %v355, 0
        %v408 = vsel %vm364, %v356, 0
        %v411 = vsel %vm364, %v357, 0
        %v414 = vsel %vm364, %v358, 0
        %416 = vmatpush.xpose.msra.mxu0 %v414
        %417 = vmatpush.xpose.msra.mxu0 %v411
        %418 = vmatpush.xpose.msra.mxu0 %v408
        %419 = vmatpush.xpose.msra.mxu0 %v405
        %420 = vmatpush.xpose.msra.mxu0 %v402
        %421 = vmatpush.xpose.msra.mxu0 %v399
        %422 = vmatpush.xpose.msra.mxu0 %v396
        %423 = vmatpush.xpose.msra.mxu0 %v393
        %424 = vmatpush.xpose.msra.mxu0 %v390
        %425 = vmatpush.xpose.msra.mxu0 %v387
        %426 = vmatpush.xpose.msra.mxu0 %v384
        %427 = vmatpush.xpose.msra.mxu0 %v381
        %428 = vmatpush.xpose.msra.mxu0 %v378
        %429 = vmatpush.xpose.msra.mxu0 %v375
        %430 = vmatpush.xpose.msra.mxu0 %v372
        %431 = vmatpush.xpose.msra.mxu0 %v369
        %432 = vmatmul.f32.gmra.mxu0 %v366
        %v433 = vpop.f32.mrf.mxu0
        %v434 = vadd.f32 %v362, %v433
        %435 = vdwg.mxu0
        %v436 = vmax.f32 %v434, 0.0
        %437 = vset.pattern.permute.xlu0 1
        %438 = vperm.xlu0 %437, %v337
        %v439 = vpop.permute.xlu0 %438
        %441 = vrot.lane.b32.xlu0 %v336, 116
        %v442 = vpop.permute.xlu0 %441
        %vm443 = vcmask 64512
        %v444 = vsel %vm443, %v442, 0
        %446 = vmatpush.msra.mxu0 0.0
        %447 = vmatpush.msra.mxu0 0.0
        %448 = vmatpush.msra.mxu0 0.0
        %449 = vmatpush.msra.mxu0 0.0
        %450 = vmatpush.msra.mxu0 0.0
        %451 = vmatpush.msra.mxu0 0.0
        %452 = vmatpush.msra.mxu0 0.0
        %453 = vmatpush.msra.mxu0 0.0
        %454 = vmatpush.msra.mxu0 0.0
        %455 = vmatpush.msra.mxu0 0.0
        %456 = vmatpush.msra.mxu0 0.0
        %457 = vmatpush.msra.mxu0 0.0
        %458 = vmatpush.msra.mxu0 0.0
        %459 = vmatpush.msra.mxu0 0.0
        %460 = vmatpush.msra.mxu0 0.0
        %461 = vmatpush.msra.mxu0 %v436
        %462 = vmatmul.f32.gmra.mxu0 %v444
        %v463 = vpop.f32.mrf.mxu0
        %v464 = vadd.f32 %v439, %v463
        %465 = vdwg.mxu0
        %vm466 = vcmp.eq.s32.totalorder %v338, 1
        %v467 = vsel %vm466, 1, 0
        %v468 = vperm.slane %v467, 0
        %vm469 = vcmp.eq.s32.totalorder %v468, 1
        %470 = vset.pattern.permute.xlu0 6
        %471 = vperm.xlu0 %470, %v337
        %v472 = vpop.permute.xlu0 %471
        %474 = vset.pattern.permute.xlu0 5
        %475 = vperm.xlu0 %474, %v337
        %v476 = vpop.permute.xlu0 %475
        %v478 = vsel %vm469, %v472, %v476
        %v479 = vmul.f32 %v478, %v464
        %480 = vset.pattern.permute.xlu0 2
        %481 = vperm.xlu0 %480, %v337
        %v482 = vpop.permute.xlu0 %481
        %484 = vrot.lane.b32.xlu0 %v336, 108
        %v485 = vpop.permute.xlu0 %484
        %v486 = vsel %vm443, %v485, 0
        %488 = vmatpush.msra.mxu0 0.0
        %489 = vmatpush.msra.mxu0 0.0
        %490 = vmatpush.msra.mxu0 0.0
        %491 = vmatpush.msra.mxu0 0.0
        %492 = vmatpush.msra.mxu0 0.0
        %493 = vmatpush.msra.mxu0 0.0
        %494 = vmatpush.msra.mxu0 0.0
        %495 = vmatpush.msra.mxu0 0.0
        %496 = vmatpush.msra.mxu0 0.0
        %497 = vmatpush.msra.mxu0 0.0
        %498 = vmatpush.msra.mxu0 0.0
        %499 = vmatpush.msra.mxu0 0.0
        %500 = vmatpush.msra.mxu0 0.0
        %501 = vmatpush.msra.mxu0 0.0
        %502 = vmatpush.msra.mxu0 0.0
        %503 = vmatpush.msra.mxu0 %v479
        %504 = vmatmul.f32.gmra.mxu0 %v486
        %v505 = vpop.f32.mrf.mxu0
        %v506 = vadd.f32 %v482, %v505
        %507 = vdwg.mxu0
        %v508 = vmax.f32 %v506, 0.0
        %509 = vset.pattern.permute.xlu0 3
        %510 = vperm.xlu0 %509, %v337
        %v511 = vpop.permute.xlu0 %510
        %v513 = vmul.f32 %v511, %v508
        %v514 = vrot.slane %v513, 4
        %v515 = vadd.f32 %v513, %v514
        %v516 = vrot.slane %v515, 2
        %v517 = vadd.f32 %v515, %v516
        %v518 = vrot.slane %v517, 1
        %v519 = vadd.f32 %v517, %v518
        %520 = vset.pattern.permute.xlu0 4
        %521 = vperm.xlu0 %520, %v337
        %v522 = vpop.permute.xlu0 %521
        %v524 = vadd.f32 %v519, %v522
        %v525 = vperm.slane %v524, 0
        %v526 = vsel %vm342, %v525, -1e+30
        %vm527 = vcmask 1041408
        %v528 = vsel %vm527, %v526, -inf
        %529 = vmax.xlane.f32.xlu0 %v528
        %v530 = vpop.xlane.xlu0 %529
        %v531 = vld [vmem:[#allocation2] sm:$0x3]
        %v532 = vmax.f32 %v531, %v530
        %v533 = vsub.f32 %v531, %v532
        %v534 = vmul.f32 %v533, 1.442695
        %v535 = vpow.pop %v534
        %537 = vset.pattern.permute.xlu0 0
        %538 = vperm.xlu0 %537, %v532
        %v539 = vpop.permute.xlu0 %538
        %v541 = vsub.f32 %v526, %v539
        %v542 = vmul.f32 %v541, 1.442695
        %v543 = vpow.pop %v542
        %v544 = vsel %vm342, %v543, 0.0
        %v545 = vld [vmem:[#allocation3] sm:$0x3]
        %v546 = vmul.f32 %v535, %v545
        %v547 = vsel %vm527, %v544, 0.0
        %548 = vadd.xlane.f32.xlu0 %v547
        %v549 = vpop.xlane.xlu0 %548
        %v550 = vadd.f32 %v546, %v549
        %vm551 = vcmask 1024
        %552 = vst.msk [vmem:[#allocation3] sm:$0x3] %vm551, %v550
        %v553 = vld [vmem:[#allocation4] sm:$0x3]
        %555 = vset.pattern.permute.xlu0 0
        %556 = vperm.xlu0 %555, %v535
        %v557 = vpop.permute.xlu0 %556
        %v559 = vmul.f32 %v557, %v553
        %560 = vmatpush.xpose.msra.mxu0 0.0
        %561 = vmatpush.xpose.msra.mxu0 0.0
        %562 = vmatpush.xpose.msra.mxu0 0.0
        %563 = vmatpush.xpose.msra.mxu0 0.0
        %564 = vmatpush.xpose.msra.mxu0 0.0
        %565 = vmatpush.xpose.msra.mxu0 0.0
        %566 = vmatpush.xpose.msra.mxu0 0.0
        %567 = vmatpush.xpose.msra.mxu0 0.0
        %568 = vmatpush.xpose.msra.mxu0 0.0
        %569 = vmatpush.xpose.msra.mxu0 0.0
        %570 = vmatpush.xpose.msra.mxu0 0.0
        %571 = vmatpush.xpose.msra.mxu0 0.0
        %572 = vmatpush.xpose.msra.mxu0 0.0
        %573 = vmatpush.xpose.msra.mxu0 0.0
        %574 = vmatpush.xpose.msra.mxu0 0.0
        %575 = vmatpush.xpose.msra.mxu0 %v464
        %576 = vmatmul.f32.gmra.mxu0 %v544
        %v577 = vpop.f32.mrf.mxu0
        %v578 = vadd.f32 0.0, %v577
        %579 = vdwg.mxu0
        %v580 = vadd.f32 %v559, %v578
        %vm581 = vcmask 58368
        %582 = vst.msk [vmem:[#allocation4] sm:$0x3] %vm581, %v580
        %583 = vst.msk [vmem:[#allocation2] sm:$0x3] %vm551, %v532
        %p584 = scmp.eq.s32.totalorder %s26, 1
        // Predicated region
        $region41: #{tpu_custom_call.1} parent=35 // pred_check
          %p585 = pneg %p584
        $region42: #{tpu_custom_call.1} parent=35 // pred_check_branch
          %587 = sbr.rel (%p585) target = $region44
        $region43: #{tpu_custom_call.1} parent=35 // pred_region
          %v588 = vld [vmem:[#allocation2] sm:$0x3]
          %589 = vst.msk [vmem:[%s322] sm:$0x3] %vm551, %v588
          %v590 = vld [vmem:[#allocation3] sm:$0x3]
          %591 = vst.msk [vmem:[%s326] sm:$0x3] %vm551, %v590
          %v592 = vld [vmem:[#allocation4] sm:$0x3]
          %593 = vst.msk [vmem:[%s301] sm:$0x3] %vm581, %v592
        $region44: #{tpu_custom_call.1} parent=35 // pred_fallthru
          _
        %p594 = scmp.lt.s32.totalorder %s25, 1
        %s595 = scalar_select %p594, %s25, 1
        %s596 = smul.addr %s595, 2
        %s597 = scalar_lea.vmem %s4, %s596
        %p598 = scmp.lt.s32.totalorder %s25, 1
        %s599 = scalar_select %p598, %s25, 1
        %s600 = smul.addr %s599, 2
        %s601 = scalar_lea.vmem %s5, %s600
        %s602 = sand.u32 %s195, 1
        %s603 = scalar_lea.sflag [#allocation6], %s602
        %s604 = sand.u32 %s195, 1
        %s605 = smul.addr %s604, 2
        %s606 = scalar_lea.vmem [#allocation5], %s605
        // Predicated region
        $region45: #{tpu_custom_call.1} parent=35 // pred_check
          %p607 = pneg %p153
        $region46: #{tpu_custom_call.1} parent=35 // pred_check_branch
          %609 = sbr.rel (%p607) target = $region48
        $region47: #{tpu_custom_call.1} parent=35 // pred_region
          _
        $region48: #{tpu_custom_call.1} parent=35 // pred_fallthru
          _
        // Predicated region
        $region49: #{tpu_custom_call.1} parent=35 // pred_check
          %p610 = pneg %p179
        $region50: #{tpu_custom_call.1} parent=35 // pred_check_branch
          %612 = sbr.rel (%p610) target = $region52
        $region51: #{tpu_custom_call.1} parent=35 // pred_region
          _
        $region52: #{tpu_custom_call.1} parent=35 // pred_fallthru
          _
        // Predicated region
        $region53: #{tpu_custom_call.1} parent=35 // pred_check
          %p613 = pneg %p205
        $region54: #{tpu_custom_call.1} parent=35 // pred_check_branch
          %615 = sbr.rel (%p613) target = $region56
        $region55: #{tpu_custom_call.1} parent=35 // pred_region
          %617 = vsyncadd %s603, 0
          %s618 = smul.addr %s25, 2
          %s619 = scalar_lea.hbm %s6, %s618
          %s621 = sshll.u32 %s606, 4
          %s622 = int_to_ptr.vmem [resolvable:$true] %s621
          %s623 = sshll.u32 %s619, 4
          %s624 = int_to_ptr.hbm [resolvable:$true] %s623
          %626 = dma.vmem_to_hbm [thread:$0]  %s622, 32, %s624, %s603
        $region56: #{tpu_custom_call.1} parent=35 // pred_fallthru
          _
      $region36: #{tpu_custom_call.1} parent=5 // pred_fallthru
        _
      %p627 = scmp.le.s32.totalorder 2, %s16
      // Predicated region
      $region57: #{tpu_custom_call.1} parent=5 // pred_check
        %p628 = pneg %p627
      $region58: #{tpu_custom_call.1} parent=5 // pred_check_branch
        %630 = sbr.rel (%p628) target = $region60
      $region59: #{tpu_custom_call.1} parent=5 // pred_region
        %s631 = ssub.s32 %s16, 2
        // Predicated region
        $region61: #{tpu_custom_call.1} parent=59 // pred_check
          %p632 = pneg %p159
        $region62: #{tpu_custom_call.1} parent=59 // pred_check_branch
          %634 = sbr.rel (%p632) target = $region64
        $region63: #{tpu_custom_call.1} parent=59 // pred_region
          %p635 = scmp.lt.s32.totalorder %s27, 1
          %s636 = scalar_select %p635, %s27, 1
          %s637 = smul.addr %s636, 2
          %s638 = scalar_lea.vmem %s4, %s637
        $region64: #{tpu_custom_call.1} parent=59 // pred_fallthru
          _
        // Predicated region
        $region65: #{tpu_custom_call.1} parent=59 // pred_check
          %p639 = pneg %p185
        $region66: #{tpu_custom_call.1} parent=59 // pred_check_branch
          %641 = sbr.rel (%p639) target = $region68
        $region67: #{tpu_custom_call.1} parent=59 // pred_region
          %p642 = scmp.lt.s32.totalorder %s27, 1
          %s643 = scalar_select %p642, %s27, 1
          %s644 = smul.addr %s643, 2
          %s645 = scalar_lea.vmem %s5, %s644
        $region68: #{tpu_custom_call.1} parent=59 // pred_fallthru
          _
        // Predicated region
        $region69: #{tpu_custom_call.1} parent=59 // pred_check
          %p646 = pneg %p211
        $region70: #{tpu_custom_call.1} parent=59 // pred_check_branch
          %648 = sbr.rel (%p646) target = $region72
        $region71: #{tpu_custom_call.1} parent=59 // pred_region
          %s649 = sand.u32 %s196, 1
          %s650 = scalar_lea.sflag [#allocation6], %s649
          %s651 = sand.u32 %s196, 1
          %s652 = smul.addr %s651, 2
          %s653 = scalar_lea.vmem [#allocation5], %s652
          %655 = dma.done %s650, 32
        $region72: #{tpu_custom_call.1} parent=59 // pred_fallthru
          _
      $region60: #{tpu_custom_call.1} parent=5 // pred_fallthru
        _
    $region6: #{tpu_custom_call.1} parent=1 // loop_footer
      %s20 = sadd.s32 1, %s16
    $region7: #{tpu_custom_call.1} parent=1 // loop_footer_branch
      %15 = sbr.rel target = $region3
    $region8: #{tpu_custom_call.1} parent=1 // loop_exit
      _
    %656 = vsyncpa [#allocation6], 1
    %s657 = scalar_lea.sflag [#allocation6], 1
    %658 = vsyncpa %s657, 1

</llo_original>
